<compile_context>
chip_gen: v5e
topology: v5e:2x2
jax: 0.10.0
libtpu: 0.0.40
codegen_flags: <defaults>
</compile_context>

<pallas_src>
import jax
import jax.numpy as jnp
from jax.experimental import pallas as pl
from jax.experimental.pallas import tpu as pltpu


def gcmc_kernel(ufeat_ref, ifeat_t_ref, wu_t_ref, wi_ref, a_ref,
                du_ref, di_ref, di_t_ref, out_u_ref, out_i_ref):
    # one grid step == one rating value r; outputs are VMEM-resident across r.
    r = pl.program_id(0)
    msg_dim = wu_t_ref.shape[-1]
    out_w = out_u_ref.shape[-1]                 # R * msg_dim (static)

    @pl.when(r == 0)
    def _init():
        out_u_ref[...] = jnp.zeros_like(out_u_ref)
        out_i_ref[...] = jnp.zeros_like(out_i_ref)

    ufeat = ufeat_ref[...]                      # (num_u, in_dim)   f32
    ifeat_t = ifeat_t_ref[...]                  # (in_dim, num_i)   f32
    wu_t = wu_t_ref[...]                        # (in_dim, msg_dim) f32 (pre-transposed)
    wi = wi_ref[...]                            # (msg_dim, in_dim) f32
    a = a_ref[...]                              # (num_i, num_u)    f32, 0/1
    du = du_ref[...]                            # (num_u, 1)        f32
    di = di_ref[...]                            # (num_i, 1)        f32
    di_t = di_t_ref[...]                        # (1, num_i)        f32

    # Per-rating Linear (no bias) + pre-aggregation sqrt_deg scaling.
    # TODO(synk): non-zero dropout_rate on sqrt_deg would need pltpu.prng_* masking.
    x_u = jnp.dot(ufeat, wu_t, preferred_element_type=jnp.float32) * du       # (num_u, msg)
    x_i_t = jnp.dot(wi, ifeat_t, preferred_element_type=jnp.float32) * di_t   # (msg, num_i)

    # copy_u + fn.sum aggregation == dense adjacency matmuls.
    #   items gather users:  h_i   = A @ x_u
    #   users gather items:  h_u^T = x_i^T @ A   (wide-N orientation: big A tile
    #   never transposed; only the small result is)
    h_i = jnp.dot(a, x_u, preferred_element_type=jnp.float32)                 # (num_i, msg)
    h_u_t = jnp.dot(x_i_t, a, preferred_element_type=jnp.float32)             # (msg, num_u)
    h_u = h_u_t.T                                                             # (num_u, msg) small XLU transpose

    # Post-aggregation sqrt_deg scaling + ReLU (agg_act=True).
    res_u = jnp.maximum(h_u * du, 0.0)
    res_i = jnp.maximum(h_i * di, 0.0)

    # Scatter this rating's msg_dim-wide slice into columns
    # [r*msg_dim, (r+1)*msg_dim) of the resident stacked output via an exact 0/1
    # placement matmul: avoids dynamic lane-offset stores and keeps the HBM
    # writeback a single lane-dense slab written once after the last rating.
    rows = jax.lax.broadcasted_iota(jnp.int32, (msg_dim, out_w), 0)
    cols = jax.lax.broadcasted_iota(jnp.int32, (msg_dim, out_w), 1)
    sel = jnp.where(cols == rows + r * msg_dim, 1.0, 0.0).astype(jnp.float32)  # (msg, R*msg)
    out_u_ref[...] += jnp.dot(res_u, sel, preferred_element_type=jnp.float32)
    out_i_ref[...] += jnp.dot(res_i, sel, preferred_element_type=jnp.float32)


def gcmc_forward(ufeat, ifeat, w_u, w_i, adj, sqrt_deg_u, sqrt_deg_i):
    """ufeat (num_u,in_dim), ifeat (num_i,in_dim), w_* (R,msg_dim,in_dim),
    adj (R,num_i,num_u) dense 0/1 per-rating adjacency, sqrt_deg_* (n,1)."""
    R, msg_dim, in_dim = w_u.shape
    num_u = ufeat.shape[0]
    num_i = ifeat.shape[0]

    # One-time XLA-side layout plumbing (outside the kernel):
    #  * pre-transpose W_u -> (R, in_dim, msg_dim) and ifeat -> (in_dim, num_i)
    #    so the kernel never transposes an operand.
    # TODO(synk): on real TPU-only deployments the adjacency/features could be
    # streamed as bf16 (0/1 adjacency is exact) for a 2x HBM-byte cut; kept f32
    # here so the dots execute on every backend (incl. interpret mode).
    ufeat_f = ufeat.astype(jnp.float32)
    ifeat_t = ifeat.T.astype(jnp.float32)
    w_u_t = jnp.transpose(w_u, (0, 2, 1)).astype(jnp.float32)
    w_i_f = w_i.astype(jnp.float32)
    adj_f = adj.astype(jnp.float32)
    du = sqrt_deg_u.astype(jnp.float32).reshape(num_u, 1)
    di = sqrt_deg_i.astype(jnp.float32).reshape(num_i, 1)
    di_t = di.reshape(1, num_i)

    flops = (2 * R * (num_u + num_i) * in_dim * msg_dim      # per-rating Linears
             + 4 * R * num_i * num_u * msg_dim               # two adjacency matmuls
             + 4 * R * (num_u + num_i) * msg_dim * R * msg_dim)  # placement scatter
    bytes_accessed = (
        4 * (adj_f.size + ufeat_f.size + ifeat_t.size + w_u_t.size + w_i_f.size)
        + 4 * (du.size + di.size + di_t.size)
        + 4 * (num_u + num_i) * R * msg_dim)

    # TODO(synk): for real GCMC graph sizes add node tiling — grid=(R, item_tiles,
    # user_tiles) with ~(512,1024) A tiles, f32 VMEM accumulators (pl.when init /
    # writeback), x_u/x_i cached per rating, and a vmem_limit_bytes budget sized
    # for v7x's 64 MiB VMEM. At these toy shapes everything fits in VMEM, so the
    # kernel streams one full A[r] per grid step.
    out_u, out_i = pl.pallas_call(
        gcmc_kernel,
        out_shape=(jax.ShapeDtypeStruct((num_u, R * msg_dim), jnp.float32),
                   jax.ShapeDtypeStruct((num_i, R * msg_dim), jnp.float32)),
        grid_spec=pltpu.PrefetchScalarGridSpec(
            num_scalar_prefetch=0,
            grid=(R,),
            in_specs=[
                pl.BlockSpec((num_u, in_dim), lambda r: (0, 0)),                      # ufeat
                pl.BlockSpec((in_dim, num_i), lambda r: (0, 0)),                      # ifeat^T
                pl.BlockSpec((pl.Squeezed(), in_dim, msg_dim), lambda r: (r, 0, 0)),  # W_u[r]^T
                pl.BlockSpec((pl.Squeezed(), msg_dim, in_dim), lambda r: (r, 0, 0)),  # W_i[r]
                pl.BlockSpec((pl.Squeezed(), num_i, num_u), lambda r: (r, 0, 0)),     # A[r]
                pl.BlockSpec((num_u, 1), lambda r: (0, 0)),                           # sqrt_deg_u
                pl.BlockSpec((num_i, 1), lambda r: (0, 0)),                           # sqrt_deg_i
                pl.BlockSpec((1, num_i), lambda r: (0, 0)),                           # sqrt_deg_i^T
            ],
            out_specs=[
                # Constant block index -> outputs stay VMEM-resident across r and
                # are written back to HBM once, already in DGL 'stack' layout.
                pl.BlockSpec((num_u, R * msg_dim), lambda r: (0, 0)),
                pl.BlockSpec((num_i, R * msg_dim), lambda r: (0, 0)),
            ],
        ),
        compiler_params=pltpu.CompilerParams(
            # r writes into resident/accumulated outputs -> must be sequential.
            dimension_semantics=("arbitrary",)),
        cost_estimate=pl.CostEstimate(flops=flops, transcendentals=0,
                                      bytes_accessed=bytes_accessed),
    )(ufeat_f, ifeat_t, w_u_t, w_i_f, adj_f, du, di, di_t)

    return out_u, out_i


def gcmc_reference(ufeat, ifeat, w_u, w_i, adj, sqrt_deg_u, sqrt_deg_i):
    """Pure-JAX f32 reference mirroring the PyTorch/DGL forward."""
    R = w_u.shape[0]
    hu, hi = [], []
    for r in range(R):
        x_u = (ufeat @ w_u[r].T) * sqrt_deg_u
        x_i = (ifeat @ w_i[r].T) * sqrt_deg_i
        hi.append(adj[r] @ x_u)
        hu.append(adj[r].T @ x_i)
    hu = jnp.stack(hu, axis=1).reshape(ufeat.shape[0], -1)   # (num_u, R*msg_dim)
    hi = jnp.stack(hi, axis=1).reshape(ifeat.shape[0], -1)
    return (jax.nn.relu(hu * sqrt_deg_u), jax.nn.relu(hi * sqrt_deg_i))


if __name__ == "__main__":
    R, num_u, num_i, in_dim, msg_dim = 3, 16, 24, 32, 16   # rating_vals = [1, 2, 3]

    key = jax.random.PRNGKey(0)
    k0, k1, k2, k3, k4 = jax.random.split(key, 5)

    ufeat = jax.random.normal(k0, (num_u, in_dim), jnp.float32)
    ifeat = jax.random.normal(k1, (num_i, in_dim), jnp.float32)

    # per-rating Linear weights (kaiming-uniform-like range), no bias
    scale = 1.0 / jnp.sqrt(jnp.float32(in_dim))
    w_u = jax.random.uniform(k2, (R, msg_dim, in_dim), jnp.float32, -scale, scale)
    w_i = jax.random.uniform(k3, (R, msg_dim, in_dim), jnp.float32, -scale, scale)
    # (share_user_item_param=False; set w_i = w_u to model the shared case)

    # synthetic bipartite graph: each (user, item) pair rated in {0..R}, 0 = no edge
    rating_assign = jax.random.randint(k4, (num_i, num_u), 0, R + 1)
    adj = jnp.stack([(rating_assign == (r + 1)).astype(jnp.float32) for r in range(R)], axis=0)

    deg_u = jnp.sum(adj, axis=(0, 1))                       # (num_u,)
    deg_i = jnp.sum(adj, axis=(0, 2))                       # (num_i,)
    sqrt_deg_u = (1.0 / jnp.sqrt(jnp.maximum(deg_u, 1.0))).reshape(num_u, 1)
    sqrt_deg_i = (1.0 / jnp.sqrt(jnp.maximum(deg_i, 1.0))).reshape(num_i, 1)

    u_out, i_out = jax.jit(gcmc_forward)(
        ufeat, ifeat, w_u, w_i, adj, sqrt_deg_u, sqrt_deg_i)
    jax.block_until_ready((u_out, i_out))

    u_ref, i_ref = gcmc_reference(ufeat, ifeat, w_u, w_i, adj, sqrt_deg_u, sqrt_deg_i)
    assert u_out.shape == (num_u, R * msg_dim) and i_out.shape == (num_i, R * msg_dim)
    # f32 end-to-end -> tight tolerances
    assert jnp.allclose(u_out, u_ref, atol=1e-4, rtol=1e-4)
    assert jnp.allclose(i_out, i_ref, atol=1e-4, rtol=1e-4)

    print("KERNEL_OK")
</pallas_src>

<mosaic_0001>
module attributes {stable_mosaic.version = 11 : i64} {
  func.func @gcmc_kernel(%arg0: i32, %arg1: memref<16x32xf32, #tpu.memory_space<vmem>>, %arg2: memref<32x24xf32, #tpu.memory_space<vmem>>, %arg3: memref<1x32x16xf32, #tpu.memory_space<vmem>>, %arg4: memref<1x16x32xf32, #tpu.memory_space<vmem>>, %arg5: memref<1x24x16xf32, #tpu.memory_space<vmem>>, %arg6: memref<16x1xf32, #tpu.memory_space<vmem>>, %arg7: memref<24x1xf32, #tpu.memory_space<vmem>>, %arg8: memref<1x24xf32, #tpu.memory_space<vmem>>, %arg9: memref<16x48xf32, #tpu.memory_space<vmem>>, %arg10: memref<24x48xf32, #tpu.memory_space<vmem>>) attributes {dimension_semantics = [#tpu.dimension_semantics<arbitrary>], iteration_bounds = array<i64: 3>, scalar_prefetch = 0 : i64, scratch_operands = 0 : i64, tpu.core_type = #tpu.core_type<tc>, window_params = [{pipeline_mode = #tpu.pipeline_mode<synchronous>, transform_indices = @transform_0, window_bounds = array<i64: 16, 32>}, {pipeline_mode = #tpu.pipeline_mode<synchronous>, transform_indices = @transform_1, window_bounds = array<i64: 32, 24>}, {transform_indices = @transform_2, window_bounds = array<i64: 1, 32, 16>}, {transform_indices = @transform_3, window_bounds = array<i64: 1, 16, 32>}, {transform_indices = @transform_4, window_bounds = array<i64: 1, 24, 16>}, {pipeline_mode = #tpu.pipeline_mode<synchronous>, transform_indices = @transform_5, window_bounds = array<i64: 16, 1>}, {pipeline_mode = #tpu.pipeline_mode<synchronous>, transform_indices = @transform_6, window_bounds = array<i64: 24, 1>}, {pipeline_mode = #tpu.pipeline_mode<synchronous>, transform_indices = @transform_7, window_bounds = array<i64: 1, 24>}, {pipeline_mode = #tpu.pipeline_mode<synchronous>, transform_indices = @transform_8, window_bounds = array<i64: 16, 48>}, {pipeline_mode = #tpu.pipeline_mode<synchronous>, transform_indices = @transform_9, window_bounds = array<i64: 24, 48>}]} {
    %c0_i32 = arith.constant 0 : i32
    %0 = arith.cmpi eq, %arg0, %c0_i32 : i32
    %1 = arith.extui %0 : i1 to i32
    %c0_i32_0 = arith.constant 0 : i32
    %2 = arith.cmpi ne, %1, %c0_i32_0 : i32
    scf.if %2 {
      %cst_36 = arith.constant 0.000000e+00 : f32
      %48 = vector.broadcast %cst_36 : f32 to vector<16x48xf32>
      %c0_37 = arith.constant 0 : index
      %c0_38 = arith.constant 0 : index
      %49 = vector.load %arg9[%c0_37, %c0_38] : memref<16x48xf32, #tpu.memory_space<vmem>>, vector<16x48xf32>
      tpu.vector_store %arg9[%c0_37, %c0_38], %48 {strides = array<i32>} : memref<16x48xf32, #tpu.memory_space<vmem>>, vector<16x48xf32>,
      %cst_39 = arith.constant 0.000000e+00 : f32
      %50 = vector.broadcast %cst_39 : f32 to vector<24x48xf32>
      %c0_40 = arith.constant 0 : index
      %c0_41 = arith.constant 0 : index
      %51 = vector.load %arg10[%c0_40, %c0_41] : memref<24x48xf32, #tpu.memory_space<vmem>>, vector<24x48xf32>
      tpu.vector_store %arg10[%c0_40, %c0_41], %50 {strides = array<i32>} : memref<24x48xf32, #tpu.memory_space<vmem>>, vector<24x48xf32>,
    } else {
    }
    %c0 = arith.constant 0 : index
    %c0_1 = arith.constant 0 : index
    %3 = vector.load %arg1[%c0, %c0_1] : memref<16x32xf32, #tpu.memory_space<vmem>>, vector<16x32xf32>
    %c0_2 = arith.constant 0 : index
    %c0_3 = arith.constant 0 : index
    %4 = vector.load %arg2[%c0_2, %c0_3] : memref<32x24xf32, #tpu.memory_space<vmem>>, vector<32x24xf32>
    %c0_4 = arith.constant 0 : index
    %c0_5 = arith.constant 0 : index
    %c0_6 = arith.constant 0 : index
    %5 = vector.load %arg3[%c0_4, %c0_5, %c0_6] : memref<1x32x16xf32, #tpu.memory_space<vmem>>, vector<1x32x16xf32>
    %6 = vector.shape_cast %5 : vector<1x32x16xf32> to vector<32x16xf32>
    %c0_7 = arith.constant 0 : index
    %c0_8 = arith.constant 0 : index
    %c0_9 = arith.constant 0 : index
    %7 = vector.load %arg4[%c0_7, %c0_8, %c0_9] : memref<1x16x32xf32, #tpu.memory_space<vmem>>, vector<1x16x32xf32>
    %8 = vector.shape_cast %7 : vector<1x16x32xf32> to vector<16x32xf32>
    %c0_10 = arith.constant 0 : index
    %c0_11 = arith.constant 0 : index
    %c0_12 = arith.constant 0 : index
    %9 = vector.load %arg5[%c0_10, %c0_11, %c0_12] : memref<1x24x16xf32, #tpu.memory_space<vmem>>, vector<1x24x16xf32>
    %10 = vector.shape_cast %9 : vector<1x24x16xf32> to vector<24x16xf32>
    %c0_13 = arith.constant 0 : index
    %c0_14 = arith.constant 0 : index
    %11 = vector.load %arg6[%c0_13, %c0_14] : memref<16x1xf32, #tpu.memory_space<vmem>>, vector<16x1xf32>
    %c0_15 = arith.constant 0 : index
    %c0_16 = arith.constant 0 : index
    %12 = vector.load %arg7[%c0_15, %c0_16] : memref<24x1xf32, #tpu.memory_space<vmem>>, vector<24x1xf32>
    %c0_17 = arith.constant 0 : index
    %c0_18 = arith.constant 0 : index
    %13 = vector.load %arg8[%c0_17, %c0_18] : memref<1x24xf32, #tpu.memory_space<vmem>>, vector<1x24xf32>
    %cst = arith.constant dense<0.000000e+00> : vector<16x16xf32>
    %14 = tpu.matmul %3, %6, %cst {dimension_numbers = #tpu.dot_dimension_numbers<[1], [0], [0], [1], [0, 0, 1, 1], [], []>} : vector<16x32xf32>, vector<32x16xf32>, vector<16x16xf32> -> vector<16x16xf32>
    %15 = vector.broadcast %11 : vector<16x1xf32> to vector<16x16xf32>
    %16 = arith.mulf %14, %15 : vector<16x16xf32>
    %cst_19 = arith.constant dense<0.000000e+00> : vector<16x24xf32>
    %17 = tpu.matmul %8, %4, %cst_19 {dimension_numbers = #tpu.dot_dimension_numbers<[1], [0], [0], [1], [0, 0, 1, 1], [], []>} : vector<16x32xf32>, vector<32x24xf32>, vector<16x24xf32> -> vector<16x24xf32>
    %18 = vector.broadcast %13 : vector<1x24xf32> to vector<16x24xf32>
    %19 = arith.mulf %17, %18 : vector<16x24xf32>
    %cst_20 = arith.constant dense<0.000000e+00> : vector<24x16xf32>
    %20 = tpu.matmul %10, %16, %cst_20 {dimension_numbers = #tpu.dot_dimension_numbers<[1], [0], [0], [1], [0, 0, 1, 1], [], []>} : vector<24x16xf32>, vector<16x16xf32>, vector<24x16xf32> -> vector<24x16xf32>
    %cst_21 = arith.constant dense<0.000000e+00> : vector<16x16xf32>
    %21 = tpu.matmul %19, %10, %cst_21 {dimension_numbers = #tpu.dot_dimension_numbers<[1], [0], [0], [1], [0, 0, 1, 1], [], []>} : vector<16x24xf32>, vector<24x16xf32>, vector<16x16xf32> -> vector<16x16xf32>
    %22 = tpu.transpose %21, [1, 0] : vector<16x16xf32> -> vector<16x16xf32>
    %23 = vector.broadcast %11 : vector<16x1xf32> to vector<16x16xf32>
    %24 = arith.mulf %22, %23 : vector<16x16xf32>
    %cst_22 = arith.constant 0.000000e+00 : f32
    %25 = vector.broadcast %cst_22 : f32 to vector<16x16xf32>
    %26 = arith.maximumf %24, %25 : vector<16x16xf32>
    %27 = vector.broadcast %12 : vector<24x1xf32> to vector<24x16xf32>
    %28 = arith.mulf %20, %27 : vector<24x16xf32>
    %cst_23 = arith.constant 0.000000e+00 : f32
    %29 = vector.broadcast %cst_23 : f32 to vector<24x16xf32>
    %30 = arith.maximumf %28, %29 : vector<24x16xf32>
    %31 = tpu.iota {dimensions = array<i32: 0>} : vector<16x48xi32>
    %32 = tpu.iota {dimensions = array<i32: 1>} : vector<16x48xi32>
    %c16_i32 = arith.constant 16 : i32
    %33 = arith.muli %arg0, %c16_i32 : i32
    %34 = vector.broadcast %33 : i32 to vector<16x48xi32>
    %35 = arith.addi %31, %34 : vector<16x48xi32>
    %36 = arith.cmpi eq, %32, %35 : vector<16x48xi32>
    %cst_24 = arith.constant 1.000000e+00 : f32
    %cst_25 = arith.constant 0.000000e+00 : f32
    %37 = vector.broadcast %cst_24 : f32 to vector<16x48xf32>
    %38 = vector.broadcast %cst_25 : f32 to vector<16x48xf32>
    %39 = arith.select %36, %37, %38 : vector<16x48xi1>, vector<16x48xf32>
    %c0_26 = arith.constant 0 : index
    %c0_27 = arith.constant 0 : index
    %40 = vector.load %arg9[%c0_26, %c0_27] : memref<16x48xf32, #tpu.memory_space<vmem>>, vector<16x48xf32>
    %cst_28 = arith.constant dense<0.000000e+00> : vector<16x48xf32>
    %41 = tpu.matmul %26, %39, %cst_28 {dimension_numbers = #tpu.dot_dimension_numbers<[1], [0], [0], [1], [0, 0, 1, 1], [], []>} : vector<16x16xf32>, vector<16x48xf32>, vector<16x48xf32> -> vector<16x48xf32>
    %42 = arith.addf %40, %41 : vector<16x48xf32>
    %c0_29 = arith.constant 0 : index
    %c0_30 = arith.constant 0 : index
    %43 = vector.load %arg9[%c0_29, %c0_30] : memref<16x48xf32, #tpu.memory_space<vmem>>, vector<16x48xf32>
    tpu.vector_store %arg9[%c0_29, %c0_30], %42 {strides = array<i32>} : memref<16x48xf32, #tpu.memory_space<vmem>>, vector<16x48xf32>,
    %c0_31 = arith.constant 0 : index
    %c0_32 = arith.constant 0 : index
    %44 = vector.load %arg10[%c0_31, %c0_32] : memref<24x48xf32, #tpu.memory_space<vmem>>, vector<24x48xf32>
    %cst_33 = arith.constant dense<0.000000e+00> : vector<24x48xf32>
    %45 = tpu.matmul %30, %39, %cst_33 {dimension_numbers = #tpu.dot_dimension_numbers<[1], [0], [0], [1], [0, 0, 1, 1], [], []>} : vector<24x16xf32>, vector<16x48xf32>, vector<24x48xf32> -> vector<24x48xf32>
    %46 = arith.addf %44, %45 : vector<24x48xf32>
    %c0_34 = arith.constant 0 : index
    %c0_35 = arith.constant 0 : index
    %47 = vector.load %arg10[%c0_34, %c0_35] : memref<24x48xf32, #tpu.memory_space<vmem>>, vector<24x48xf32>
    tpu.vector_store %arg10[%c0_34, %c0_35], %46 {strides = array<i32>} : memref<24x48xf32, #tpu.memory_space<vmem>>, vector<24x48xf32>,
    return
  }
  func.func @transform_0(%arg0: i32) -> (i32, i32) {
    %c0_i32 = arith.constant 0 : i32
    %c0_i32_0 = arith.constant 0 : i32
    %c0_i32_1 = arith.constant 0 : i32
    return %c0_i32, %c0_i32_0 : i32, i32
  }
  func.func @transform_1(%arg0: i32) -> (i32, i32) {
    %c0_i32 = arith.constant 0 : i32
    %c0_i32_0 = arith.constant 0 : i32
    %c0_i32_1 = arith.constant 0 : i32
    return %c0_i32, %c0_i32_0 : i32, i32
  }
  func.func @transform_2(%arg0: i32) -> (i32, i32, i32) {
    %c0_i32 = arith.constant 0 : i32
    %c0_i32_0 = arith.constant 0 : i32
    %c0_i32_1 = arith.constant 0 : i32
    return %arg0, %c0_i32, %c0_i32_0 : i32, i32, i32
  }
  func.func @transform_3(%arg0: i32) -> (i32, i32, i32) {
    %c0_i32 = arith.constant 0 : i32
    %c0_i32_0 = arith.constant 0 : i32
    %c0_i32_1 = arith.constant 0 : i32
    return %arg0, %c0_i32, %c0_i32_0 : i32, i32, i32
  }
  func.func @transform_4(%arg0: i32) -> (i32, i32, i32) {
    %c0_i32 = arith.constant 0 : i32
    %c0_i32_0 = arith.constant 0 : i32
    %c0_i32_1 = arith.constant 0 : i32
    return %arg0, %c0_i32, %c0_i32_0 : i32, i32, i32
  }
  func.func @transform_5(%arg0: i32) -> (i32, i32) {
    %c0_i32 = arith.constant 0 : i32
    %c0_i32_0 = arith.constant 0 : i32
    %c0_i32_1 = arith.constant 0 : i32
    return %c0_i32, %c0_i32_0 : i32, i32
  }
  func.func @transform_6(%arg0: i32) -> (i32, i32) {
    %c0_i32 = arith.constant 0 : i32
    %c0_i32_0 = arith.constant 0 : i32
    %c0_i32_1 = arith.constant 0 : i32
    return %c0_i32, %c0_i32_0 : i32, i32
  }
  func.func @transform_7(%arg0: i32) -> (i32, i32) {
    %c0_i32 = arith.constant 0 : i32
    %c0_i32_0 = arith.constant 0 : i32
    %c0_i32_1 = arith.constant 0 : i32
    return %c0_i32, %c0_i32_0 : i32, i32
  }
  func.func @transform_8(%arg0: i32) -> (i32, i32) {
    %c0_i32 = arith.constant 0 : i32
    %c0_i32_0 = arith.constant 0 : i32
    %c0_i32_1 = arith.constant 0 : i32
    return %c0_i32, %c0_i32_0 : i32, i32
  }
  func.func @transform_9(%arg0: i32) -> (i32, i32) {
    %c0_i32 = arith.constant 0 : i32
    %c0_i32_0 = arith.constant 0 : i32
    %c0_i32_1 = arith.constant 0 : i32
    return %c0_i32, %c0_i32_0 : i32, i32
  }
}

</mosaic_0001>

<llo_original>
// kernel: gcmc_forward.1
$region0: #{gcmc_forward.1}
  #allocation0 [shape = 'u32[]', space=smem, size = 0x4, offset = 0x4, fixed_abs, tag = 'smem constant byte address 0x4 - core index']
  #allocation1 [shape = 'u32[72,128]{1,0:T(1,128)}', space=vmem, size = 0x9000, scoped, tag = 'internal scratch']
  %s0 = inlined_call_operand.vmem [shape: f32[16,32], index: 0, kind: input, shape index: {}]
  %s1 = inlined_call_operand.vmem [shape: f32[32,24], index: 1, kind: input, shape index: {}]
  %s2 = inlined_call_operand.vmem [shape: f32[3,32,16], index: 2, kind: input, shape index: {}]
  %s3 = inlined_call_operand.vmem [shape: f32[3,16,32], index: 3, kind: input, shape index: {}]
  %s4 = inlined_call_operand.vmem [shape: f32[3,24,16], index: 4, kind: input, shape index: {}]
  %s5 = inlined_call_operand.vmem [shape: f32[16,1], index: 5, kind: input, shape index: {}]
  %s6 = inlined_call_operand.vmem [shape: f32[24,1], index: 6, kind: input, shape index: {}]
  %s7 = inlined_call_operand.vmem [shape: f32[1,24], index: 7, kind: input, shape index: {}]
  %s8 = inlined_call_operand.hbm [shape: f32[16,48], index: 8, kind: output, shape index: {0}]
  %s9 = inlined_call_operand.hbm [shape: f32[24,48], index: 9, kind: output, shape index: {1}]
  %10 = xla_tuple %s8, %s9
  %s11 = sld [smem:[#allocation0]]
  $region77: #{gcmc_forward.1} parent=0
    _
  %s13 = ssub.s32 1, %s11
  %s14 = scalar_select 0, %s13, %s11
  $region1: #{gcmc_forward.1} parent=0
    #allocation2 [shape = 'u8[8192]{0}', space=vmem, size = 0x2000, scoped, tag = 'output window, operand 0, single buffered']
    #allocation3 [shape = 's32[2]{0}', space=sflag, size = 0x8, scoped, tag = 'scoped memory for gcmc_forward.1']
    #allocation4 [shape = 'u8[12288]{0}', space=vmem, size = 0x3000, scoped, tag = 'output window, operand 1, single buffered']
    #allocation5 [shape = 's32[1]{0}', space=sflag, size = 0x4, scoped, tag = 'scoped memory for gcmc_forward.1']
    %15 = vsyncpa [#allocation3], 0
    %16 = vsyncpa [#allocation5], 0
    loop: start=0, step=1, limit=5
    $region2: #{gcmc_forward.1} parent=1 // loop_pre_header
      _
    $region3: #{gcmc_forward.1} parent=1 // loop_header
      %s18 = sphi 0, %s22
      %p19 = scmp.ge.s32.totalorder %s18, 5
      %s26 = sphi 0, %s26
      %s28 = sphi 0, %s26
      %s29 = sphi 0, %s28
      %s43 = sphi 0, %s29
      %s47 = sphi 0, %s47
      %s49 = sphi 0, %s47
      %s50 = sphi 0, %s49
      %s64 = sphi 0, %s50
      %s70 = sphi 0, %s72
      %s73 = sphi 0, %s70
      %s74 = sphi 0, %s73
      %s90 = sphi 0, %s74
      %s96 = sphi 0, %s98
      %s99 = sphi 0, %s96
      %s100 = sphi 0, %s99
      %s116 = sphi 0, %s100
      %s122 = sphi 0, %s124
      %s125 = sphi 0, %s122
      %s126 = sphi 0, %s125
      %s142 = sphi 0, %s126
      %s146 = sphi 0, %s146
      %s148 = sphi 0, %s146
      %s149 = sphi 0, %s148
      %s163 = sphi 0, %s149
      %s167 = sphi 0, %s167
      %s169 = sphi 0, %s167
      %s170 = sphi 0, %s169
      %s184 = sphi 0, %s170
      %s188 = sphi 0, %s188
      %s190 = sphi 0, %s188
      %s191 = sphi 0, %s190
      %s205 = sphi 0, %s191
      %s209 = sphi 0, %s209
      %s211 = sphi 0, %s209
      %s212 = sphi 0, %s211
      %s226 = sphi 0, %s212
      %s230 = sphi 0, %s230
      %s232 = sphi 0, %s230
      %s233 = sphi 0, %s232
      %s247 = sphi 0, %s233
    $region4: #{gcmc_forward.1} parent=1 // loop_header_branch
      %21 = sbr.rel (%p19) target = $region8
    $region5: #{gcmc_forward.1} parent=1 // loop_body
      %s23 = ssub.s32 %s18, 1
      %s24 = ssub.s32 %s18, 2
      %s25 = sadd.s32 %s18, 1
      %s27 = sadd.s32 %s26, 1
      %p30 = scmp.eq.s32.totalorder %s18, 2
      %p31 = scmp.ne.s32.totalorder %s26, %s28
      %p32 = scmp.eq.s32.totalorder %s18, 0
      %p33 = por %p31, %p32
      %p34 = scmp.ne.s32.totalorder %s26, %s28
      %p35 = scmp.eq.s32.totalorder %s23, 2
      %p36 = por %p34, %p35
      %p37 = scmp.ne.s32.totalorder %s28, %s29
      %p38 = scmp.eq.s32.totalorder %s23, 0
      %p39 = por %p37, %p38
      %p40 = scmp.ne.s32.totalorder %s28, %s29
      %p41 = scmp.eq.s32.totalorder %s24, 2
      %p42 = por %p40, %p41
      %p44 = scmp.ne.s32.totalorder %s29, %s43
      %p45 = scmp.eq.s32.totalorder %s24, 0
      %p46 = por %p44, %p45
      %s48 = sadd.s32 %s47, 1
      %p51 = scmp.eq.s32.totalorder %s18, 2
      %p52 = scmp.ne.s32.totalorder %s47, %s49
      %p53 = scmp.eq.s32.totalorder %s18, 0
      %p54 = por %p52, %p53
      %p55 = scmp.ne.s32.totalorder %s47, %s49
      %p56 = scmp.eq.s32.totalorder %s23, 2
      %p57 = por %p55, %p56
      %p58 = scmp.ne.s32.totalorder %s49, %s50
      %p59 = scmp.eq.s32.totalorder %s23, 0
      %p60 = por %p58, %p59
      %p61 = scmp.ne.s32.totalorder %s49, %s50
      %p62 = scmp.eq.s32.totalorder %s24, 2
      %p63 = por %p61, %p62
      %p65 = scmp.ne.s32.totalorder %s50, %s64
      %p66 = scmp.eq.s32.totalorder %s24, 0
      %p67 = por %p65, %p66
      %s68 = ssub.s32 %s18, %s25
      %p69 = scmp.eq.s32.totalorder %s68, 0
      %s71 = sadd.s32 %s70, 1
      %s72 = scalar_select %p69, %s70, %s71
      %p75 = pneg %p69
      %p76 = scmp.eq.s32.totalorder %s18, 2
      %p77 = por %p75, %p76
      %p78 = scmp.ne.s32.totalorder %s70, %s73
      %p79 = scmp.eq.s32.totalorder %s18, 0
      %p80 = por %p78, %p79
      %p81 = scmp.ne.s32.totalorder %s70, %s73
      %p82 = scmp.eq.s32.totalorder %s23, 2
      %p83 = por %p81, %p82
      %p84 = scmp.ne.s32.totalorder %s73, %s74
      %p85 = scmp.eq.s32.totalorder %s23, 0
      %p86 = por %p84, %p85
      %p87 = scmp.ne.s32.totalorder %s73, %s74
      %p88 = scmp.eq.s32.totalorder %s24, 2
      %p89 = por %p87, %p88
      %p91 = scmp.ne.s32.totalorder %s74, %s90
      %p92 = scmp.eq.s32.totalorder %s24, 0
      %p93 = por %p91, %p92
      %s94 = ssub.s32 %s18, %s25
      %p95 = scmp.eq.s32.totalorder %s94, 0
      %s97 = sadd.s32 %s96, 1
      %s98 = scalar_select %p95, %s96, %s97
      %p101 = pneg %p95
      %p102 = scmp.eq.s32.totalorder %s18, 2
      %p103 = por %p101, %p102
      %p104 = scmp.ne.s32.totalorder %s96, %s99
      %p105 = scmp.eq.s32.totalorder %s18, 0
      %p106 = por %p104, %p105
      %p107 = scmp.ne.s32.totalorder %s96, %s99
      %p108 = scmp.eq.s32.totalorder %s23, 2
      %p109 = por %p107, %p108
      %p110 = scmp.ne.s32.totalorder %s99, %s100
      %p111 = scmp.eq.s32.totalorder %s23, 0
      %p112 = por %p110, %p111
      %p113 = scmp.ne.s32.totalorder %s99, %s100
      %p114 = scmp.eq.s32.totalorder %s24, 2
      %p115 = por %p113, %p114
      %p117 = scmp.ne.s32.totalorder %s100, %s116
      %p118 = scmp.eq.s32.totalorder %s24, 0
      %p119 = por %p117, %p118
      %s120 = ssub.s32 %s18, %s25
      %p121 = scmp.eq.s32.totalorder %s120, 0
      %s123 = sadd.s32 %s122, 1
      %s124 = scalar_select %p121, %s122, %s123
      %p127 = pneg %p121
      %p128 = scmp.eq.s32.totalorder %s18, 2
      %p129 = por %p127, %p128
      %p130 = scmp.ne.s32.totalorder %s122, %s125
      %p131 = scmp.eq.s32.totalorder %s18, 0
      %p132 = por %p130, %p131
      %p133 = scmp.ne.s32.totalorder %s122, %s125
      %p134 = scmp.eq.s32.totalorder %s23, 2
      %p135 = por %p133, %p134
      %p136 = scmp.ne.s32.totalorder %s125, %s126
      %p137 = scmp.eq.s32.totalorder %s23, 0
      %p138 = por %p136, %p137
      %p139 = scmp.ne.s32.totalorder %s125, %s126
      %p140 = scmp.eq.s32.totalorder %s24, 2
      %p141 = por %p139, %p140
      %p143 = scmp.ne.s32.totalorder %s126, %s142
      %p144 = scmp.eq.s32.totalorder %s24, 0
      %p145 = por %p143, %p144
      %s147 = sadd.s32 %s146, 1
      %p150 = scmp.eq.s32.totalorder %s18, 2
      %p151 = scmp.ne.s32.totalorder %s146, %s148
      %p152 = scmp.eq.s32.totalorder %s18, 0
      %p153 = por %p151, %p152
      %p154 = scmp.ne.s32.totalorder %s146, %s148
      %p155 = scmp.eq.s32.totalorder %s23, 2
      %p156 = por %p154, %p155
      %p157 = scmp.ne.s32.totalorder %s148, %s149
      %p158 = scmp.eq.s32.totalorder %s23, 0
      %p159 = por %p157, %p158
      %p160 = scmp.ne.s32.totalorder %s148, %s149
      %p161 = scmp.eq.s32.totalorder %s24, 2
      %p162 = por %p160, %p161
      %p164 = scmp.ne.s32.totalorder %s149, %s163
      %p165 = scmp.eq.s32.totalorder %s24, 0
      %p166 = por %p164, %p165
      %s168 = sadd.s32 %s167, 1
      %p171 = scmp.eq.s32.totalorder %s18, 2
      %p172 = scmp.ne.s32.totalorder %s167, %s169
      %p173 = scmp.eq.s32.totalorder %s18, 0
      %p174 = por %p172, %p173
      %p175 = scmp.ne.s32.totalorder %s167, %s169
      %p176 = scmp.eq.s32.totalorder %s23, 2
      %p177 = por %p175, %p176
      %p178 = scmp.ne.s32.totalorder %s169, %s170
      %p179 = scmp.eq.s32.totalorder %s23, 0
      %p180 = por %p178, %p179
      %p181 = scmp.ne.s32.totalorder %s169, %s170
      %p182 = scmp.eq.s32.totalorder %s24, 2
      %p183 = por %p181, %p182
      %p185 = scmp.ne.s32.totalorder %s170, %s184
      %p186 = scmp.eq.s32.totalorder %s24, 0
      %p187 = por %p185, %p186
      %s189 = sadd.s32 %s188, 1
      %p192 = scmp.eq.s32.totalorder %s18, 2
      %p193 = scmp.ne.s32.totalorder %s188, %s190
      %p194 = scmp.eq.s32.totalorder %s18, 0
      %p195 = por %p193, %p194
      %p196 = scmp.ne.s32.totalorder %s188, %s190
      %p197 = scmp.eq.s32.totalorder %s23, 2
      %p198 = por %p196, %p197
      %p199 = scmp.ne.s32.totalorder %s190, %s191
      %p200 = scmp.eq.s32.totalorder %s23, 0
      %p201 = por %p199, %p200
      %p202 = scmp.ne.s32.totalorder %s190, %s191
      %p203 = scmp.eq.s32.totalorder %s24, 2
      %p204 = por %p202, %p203
      %p206 = scmp.ne.s32.totalorder %s191, %s205
      %p207 = scmp.eq.s32.totalorder %s24, 0
      %p208 = por %p206, %p207
      %s210 = sadd.s32 %s209, 1
      %p213 = scmp.eq.s32.totalorder %s18, 2
      %p214 = scmp.ne.s32.totalorder %s209, %s211
      %p215 = scmp.eq.s32.totalorder %s18, 0
      %p216 = por %p214, %p215
      %p217 = scmp.ne.s32.totalorder %s209, %s211
      %p218 = scmp.eq.s32.totalorder %s23, 2
      %p219 = por %p217, %p218
      %p220 = scmp.ne.s32.totalorder %s211, %s212
      %p221 = scmp.eq.s32.totalorder %s23, 0
      %p222 = por %p220, %p221
      %p223 = scmp.ne.s32.totalorder %s211, %s212
      %p224 = scmp.eq.s32.totalorder %s24, 2
      %p225 = por %p223, %p224
      %p227 = scmp.ne.s32.totalorder %s212, %s226
      %p228 = scmp.eq.s32.totalorder %s24, 0
      %p229 = por %p227, %p228
      %s231 = sadd.s32 %s230, 1
      %p234 = scmp.eq.s32.totalorder %s18, 2
      %p235 = scmp.ne.s32.totalorder %s230, %s232
      %p236 = scmp.eq.s32.totalorder %s18, 0
      %p237 = por %p235, %p236
      %p238 = scmp.ne.s32.totalorder %s230, %s232
      %p239 = scmp.eq.s32.totalorder %s23, 2
      %p240 = por %p238, %p239
      %p241 = scmp.ne.s32.totalorder %s232, %s233
      %p242 = scmp.eq.s32.totalorder %s23, 0
      %p243 = por %p241, %p242
      %p244 = scmp.ne.s32.totalorder %s232, %s233
      %p245 = scmp.eq.s32.totalorder %s24, 2
      %p246 = por %p244, %p245
      %p248 = scmp.ne.s32.totalorder %s233, %s247
      %p249 = scmp.eq.s32.totalorder %s24, 0
      %p250 = por %p248, %p249
      %p251 = scmp.le.s32.totalorder 1, %s18
      %p252 = scmp.lt.s32.totalorder %s18, 4
      %p253 = pnand %p251, %p252
      %p254 = pneg %p253
      // Predicated region
      $region9: #{gcmc_forward.1} parent=5 // pred_check
        _
      $region10: #{gcmc_forward.1} parent=5 // pred_check_branch
        %256 = sbr.rel (%p253) target = $region12
      $region11: #{gcmc_forward.1} parent=5 // pred_region
        %s257 = ssub.s32 %s18, 1
        // Predicated region
        $region13: #{gcmc_forward.1} parent=11 // pred_check
          %p258 = pneg %p39
        $region14: #{gcmc_forward.1} parent=11 // pred_check_branch
          %260 = sbr.rel (%p258) target = $region16
        $region15: #{gcmc_forward.1} parent=11 // pred_region
          _
        $region16: #{gcmc_forward.1} parent=11 // pred_fallthru
          _
        // Predicated region
        $region17: #{gcmc_forward.1} parent=11 // pred_check
          %p261 = pneg %p60
        $region18: #{gcmc_forward.1} parent=11 // pred_check_branch
          %263 = sbr.rel (%p261) target = $region20
        $region19: #{gcmc_forward.1} parent=11 // pred_region
          _
        $region20: #{gcmc_forward.1} parent=11 // pred_fallthru
          _
        // Predicated region
        $region21: #{gcmc_forward.1} parent=11 // pred_check
          %p264 = pneg %p159
        $region22: #{gcmc_forward.1} parent=11 // pred_check_branch
          %266 = sbr.rel (%p264) target = $region24
        $region23: #{gcmc_forward.1} parent=11 // pred_region
          _
        $region24: #{gcmc_forward.1} parent=11 // pred_fallthru
          _
        // Predicated region
        $region25: #{gcmc_forward.1} parent=11 // pred_check
          %p267 = pneg %p180
        $region26: #{gcmc_forward.1} parent=11 // pred_check_branch
          %269 = sbr.rel (%p267) target = $region28
        $region27: #{gcmc_forward.1} parent=11 // pred_region
          _
        $region28: #{gcmc_forward.1} parent=11 // pred_fallthru
          _
        // Predicated region
        $region29: #{gcmc_forward.1} parent=11 // pred_check
          %p270 = pneg %p201
        $region30: #{gcmc_forward.1} parent=11 // pred_check_branch
          %272 = sbr.rel (%p270) target = $region32
        $region31: #{gcmc_forward.1} parent=11 // pred_region
          _
        $region32: #{gcmc_forward.1} parent=11 // pred_fallthru
          _
      $region12: #{gcmc_forward.1} parent=5 // pred_fallthru
        _
      %p273 = scmp.lt.s32.totalorder %s18, 3
      // Predicated region
      $region33: #{gcmc_forward.1} parent=5 // pred_check
        %p274 = pneg %p273
      $region34: #{gcmc_forward.1} parent=5 // pred_check_branch
        %276 = sbr.rel (%p274) target = $region36
      $region35: #{gcmc_forward.1} parent=5 // pred_region
        // Predicated region
        $region37: #{gcmc_forward.1} parent=35 // pred_check
          %p277 = pneg %p80
        $region38: #{gcmc_forward.1} parent=35 // pred_check_branch
          %279 = sbr.rel (%p277) target = $region40
        $region39: #{gcmc_forward.1} parent=35 // pred_region
          %p280 = scmp.lt.s32.totalorder %s18, 2
          %s281 = scalar_select %p280, %s18, 2
          %s282 = smul.addr %s281, 4
          %s283 = smul.addr %s282, 8
          %s284 = scalar_lea.vmem %s2, %s283
        $region40: #{gcmc_forward.1} parent=35 // pred_fallthru
          _
        // Predicated region
        $region41: #{gcmc_forward.1} parent=35 // pred_check
          %p285 = pneg %p106
        $region42: #{gcmc_forward.1} parent=35 // pred_check_branch
          %287 = sbr.rel (%p285) target = $region44
        $region43: #{gcmc_forward.1} parent=35 // pred_region
          %p288 = scmp.lt.s32.totalorder %s18, 2
          %s289 = scalar_select %p288, %s18, 2
          %s290 = smul.addr %s289, 2
          %s291 = smul.addr %s290, 8
          %s292 = scalar_lea.vmem %s3, %s291
        $region44: #{gcmc_forward.1} parent=35 // pred_fallthru
          _
        // Predicated region
        $region45: #{gcmc_forward.1} parent=35 // pred_check
          %p293 = pneg %p132
        $region46: #{gcmc_forward.1} parent=35 // pred_check_branch
          %295 = sbr.rel (%p293) target = $region48
        $region47: #{gcmc_forward.1} parent=35 // pred_region
          %p296 = scmp.lt.s32.totalorder %s18, 2
          %s297 = scalar_select %p296, %s18, 2
          %s298 = smul.addr %s297, 3
          %s299 = smul.addr %s298, 8
          %s300 = scalar_lea.vmem %s4, %s299
        $region48: #{gcmc_forward.1} parent=35 // pred_fallthru
          _
      $region36: #{gcmc_forward.1} parent=5 // pred_fallthru
        _
      %p301 = scmp.le.s32.totalorder 1, %s18
      %p302 = scmp.lt.s32.totalorder %s18, 4
      %p303 = pnand %p301, %p302
      %p304 = pneg %p303
      // Predicated region
      $region49: #{gcmc_forward.1} parent=5 // pred_check
        _
      $region50: #{gcmc_forward.1} parent=5 // pred_check_branch
        %306 = sbr.rel (%p303) target = $region52
      $region51: #{gcmc_forward.1} parent=5 // pred_region
        %s307 = ssub.s32 %s18, 1
        %p308 = pneg %p39
        %p309 = pneg %p36
        %p310 = pneg %p60
        %p311 = pneg %p57
        %p312 = scmp.lt.s32.totalorder %s23, 2
        %s313 = scalar_select %p312, %s23, 2
        %s314 = smul.addr %s313, 4
        %s315 = smul.addr %s314, 8
        %s316 = scalar_lea.vmem %s2, %s315
        %p317 = pneg %p86
        %p318 = pneg %p83
        %p319 = scmp.lt.s32.totalorder %s23, 2
        %s320 = scalar_select %p319, %s23, 2
        %s321 = smul.addr %s320, 2
        %s322 = smul.addr %s321, 8
        %s323 = scalar_lea.vmem %s3, %s322
        %p324 = pneg %p112
        %p325 = pneg %p109
        %p326 = scmp.lt.s32.totalorder %s23, 2
        %s327 = scalar_select %p326, %s23, 2
        %s328 = smul.addr %s327, 3
        %s329 = smul.addr %s328, 8
        %s330 = scalar_lea.vmem %s4, %s329
        %p331 = pneg %p138
        %p332 = pneg %p135
        %p333 = pneg %p159
        %p334 = pneg %p156
        %p335 = pneg %p180
        %p336 = pneg %p177
        %p337 = pneg %p201
        %p338 = pneg %p198
        %p339 = pneg %p222
        %p340 = pneg %p219
        %p341 = pneg %p243
        %p342 = pneg %p240
        %p343 = scmp.lt.s32.totalorder %s23, 2
        %s344 = scalar_select %p343, %s23, 2
        %s345 = smul.addr %s344, 4
        %s346 = smul.addr %s345, 8
        %s347 = scalar_lea.vmem %s2, %s346
        %p348 = scmp.lt.s32.totalorder %s23, 2
        %s349 = scalar_select %p348, %s23, 2
        %s350 = smul.addr %s349, 2
        %s351 = smul.addr %s350, 8
        %s352 = scalar_lea.vmem %s3, %s351
        %p353 = scmp.lt.s32.totalorder %s23, 2
        %s354 = scalar_select %p353, %s23, 2
        %s355 = smul.addr %s354, 3
        %s356 = smul.addr %s355, 8
        %s357 = scalar_lea.vmem %s4, %s356
        %p358 = scmp.eq.s32.totalorder %s23, 0
        // Predicated region
        $region53: #{gcmc_forward.1} parent=51 // pred_check
          %p359 = pneg %p358
        $region54: #{gcmc_forward.1} parent=51 // pred_check_branch
          %361 = sbr.rel (%p359) target = $region56
        $region55: #{gcmc_forward.1} parent=51 // pred_region
          %vm362 = vcmask 392192
          %363 = vst.msk [vmem:[#allocation2] sm:$0xff] %vm362, 0.0
          %364 = vst.msk [vmem:[#allocation2 + $0x8] sm:$0xff] %vm362, 0.0
          %365 = vst.msk [vmem:[#allocation4] sm:$0xff] %vm362, 0.0
          %366 = vst.msk [vmem:[#allocation4 + $0x8] sm:$0xff] %vm362, 0.0
          %367 = vst.msk [vmem:[#allocation4 + $0x10] sm:$0xff] %vm362, 0.0
        $region56: #{gcmc_forward.1} parent=51 // pred_fallthru
          _
        %v368 = vld [vmem:[%s0] sm:$0xff]
        %v369 = vld [vmem:[%s0 + $0x8] sm:$0xff]
        %v370 = vld [vmem:[%s1] sm:$0xff]
        %v371 = vld [vmem:[%s1 + $0x8] sm:$0xff]
        %v372 = vld [vmem:[%s1 + $0x10] sm:$0xff]
        %v373 = vld [vmem:[%s1 + $0x18] sm:$0xff]
        %v374 = vld [vmem:[%s347] sm:$0xff]
        %v375 = vld [vmem:[%s347 + $0x8] sm:$0xff]
        %v376 = vld [vmem:[%s347 + $0x10] sm:$0xff]
        %v377 = vld [vmem:[%s347 + $0x18] sm:$0xff]
        %v378 = vld [vmem:[%s352] sm:$0xff]
        %v379 = vld [vmem:[%s352 + $0x8] sm:$0xff]
        %v380 = vld [vmem:[%s357] sm:$0xff]
        %v381 = vld [vmem:[%s357 + $0x8] sm:$0xff]
        %v382 = vld [vmem:[%s357 + $0x10] sm:$0xff]
        %v383 = vld [vmem:[%s5] sm:$0xff]
        %v384 = vld [vmem:[%s5 + $0x8] sm:$0xff]
        %v385 = vld [vmem:[%s6] sm:$0xff]
        %v386 = vld [vmem:[%s6 + $0x8] sm:$0xff]
        %v387 = vld [vmem:[%s6 + $0x10] sm:$0xff]
        %v388 = vld [vmem:[%s7] sm:$0x1]
        %vm389 = vcmask 261120
        %v391 = vsel %vm389, %v368, 0
        %v394 = vsel %vm389, %v369, 0
        %396 = vmatpush.msra.mxu0 0.0
        %397 = vmatpush.msra.mxu0 0.0
        %398 = vmatpush.msra.mxu0 0.0
        %399 = vmatpush.msra.mxu0 0.0
        %400 = vmatpush.msra.mxu0 0.0
        %401 = vmatpush.msra.mxu0 0.0
        %402 = vmatpush.msra.mxu0 0.0
        %403 = vmatpush.msra.mxu0 0.0
        %404 = vmatpush.msra.mxu0 0.0
        %405 = vmatpush.msra.mxu0 0.0
        %406 = vmatpush.msra.mxu0 0.0
        %407 = vmatpush.msra.mxu0 0.0
        %408 = vmatpush.msra.mxu0 %v377
        %409 = vmatpush.msra.mxu0 %v376
        %410 = vmatpush.msra.mxu0 %v375
        %411 = vmatpush.msra.mxu0 %v374
        %412 = vmatmul.f32.gmra.mxu0 %v391
        %v413 = vpop.f32.mrf.mxu0
        %v414 = vadd.f32 0.0, %v413
        %415 = vmatmul.f32.gmra.mxu0 %v394
        %v416 = vpop.f32.mrf.mxu0
        %v417 = vadd.f32 0.0, %v416
        %418 = vdwg.mxu0
        %420 = vset.pattern.permute.xlu0 0
        %421 = vperm.xlu0 %420, %v383
        %v422 = vpop.permute.xlu0 %421
        %425 = vset.pattern.permute.xlu0 0
        %426 = vperm.xlu0 %425, %v384
        %v427 = vpop.permute.xlu0 %426
        %v429 = vmul.f32 %v414, %v422
        %v430 = vmul.f32 %v417, %v427
        %v432 = vsel %vm389, %v378, 0
        %v435 = vsel %vm389, %v379, 0
        %437 = vmatpush.msra.mxu0 0.0
        %438 = vmatpush.msra.mxu0 0.0
        %439 = vmatpush.msra.mxu0 0.0
        %440 = vmatpush.msra.mxu0 0.0
        %441 = vmatpush.msra.mxu0 0.0
        %442 = vmatpush.msra.mxu0 0.0
        %443 = vmatpush.msra.mxu0 0.0
        %444 = vmatpush.msra.mxu0 0.0
        %445 = vmatpush.msra.mxu0 0.0
        %446 = vmatpush.msra.mxu0 0.0
        %447 = vmatpush.msra.mxu0 0.0
        %448 = vmatpush.msra.mxu0 0.0
        %449 = vmatpush.msra.mxu0 %v373
        %450 = vmatpush.msra.mxu0 %v372
        %451 = vmatpush.msra.mxu0 %v371
        %452 = vmatpush.msra.mxu0 %v370
        %453 = vmatmul.f32.gmra.mxu0 %v432
        %v454 = vpop.f32.mrf.mxu0
        %v455 = vadd.f32 0.0, %v454
        %456 = vmatmul.f32.gmra.mxu0 %v435
        %v457 = vpop.f32.mrf.mxu0
        %v458 = vadd.f32 0.0, %v457
        %459 = vdwg.mxu0
        %v461 = vperm.slane %v388, 0
        %v463 = vmul.f32 %v455, %v461
        %v464 = vmul.f32 %v458, %v461
        %vm465 = vcmask 130048
        %v467 = vsel %vm465, %v380, 0
        %v470 = vsel %vm465, %v381, 0
        %v473 = vsel %vm465, %v382, 0
        %475 = vmatpush.msra.mxu0 0.0
        %476 = vmatpush.msra.mxu0 0.0
        %477 = vmatpush.msra.mxu0 0.0
        %478 = vmatpush.msra.mxu0 0.0
        %479 = vmatpush.msra.mxu0 0.0
        %480 = vmatpush.msra.mxu0 0.0
        %481 = vmatpush.msra.mxu0 0.0
        %482 = vmatpush.msra.mxu0 0.0
        %483 = vmatpush.msra.mxu0 0.0
        %484 = vmatpush.msra.mxu0 0.0
        %485 = vmatpush.msra.mxu0 0.0
        %486 = vmatpush.msra.mxu0 0.0
        %487 = vmatpush.msra.mxu0 0.0
        %488 = vmatpush.msra.mxu0 0.0
        %489 = vmatpush.msra.mxu0 %v430
        %490 = vmatpush.msra.mxu0 %v429
        %491 = vmatmul.f32.gmra.mxu0 %v467
        %v492 = vpop.f32.mrf.mxu0
        %v493 = vadd.f32 0.0, %v492
        %494 = vmatmul.f32.gmra.mxu0 %v470
        %v495 = vpop.f32.mrf.mxu0
        %v496 = vadd.f32 0.0, %v495
        %497 = vmatmul.f32.gmra.mxu0 %v473
        %v498 = vpop.f32.mrf.mxu0
        %v499 = vadd.f32 0.0, %v498
        %500 = vdwg.mxu0
        %vm501 = vcmask 195584
        %v503 = vsel %vm501, %v463, 0
        %v506 = vsel %vm501, %v464, 0
        %508 = vmatpush.msra.mxu0 0.0
        %509 = vmatpush.msra.mxu0 0.0
        %510 = vmatpush.msra.mxu0 0.0
        %511 = vmatpush.msra.mxu0 0.0
        %512 = vmatpush.msra.mxu0 0.0
        %513 = vmatpush.msra.mxu0 0.0
        %514 = vmatpush.msra.mxu0 0.0
        %515 = vmatpush.msra.mxu0 0.0
        %516 = vmatpush.msra.mxu0 0.0
        %517 = vmatpush.msra.mxu0 0.0
        %518 = vmatpush.msra.mxu0 0.0
        %519 = vmatpush.msra.mxu0 0.0
        %520 = vmatpush.msra.mxu0 0.0
        %521 = vmatpush.msra.mxu0 %v382
        %522 = vmatpush.msra.mxu0 %v381
        %523 = vmatpush.msra.mxu0 %v380
        %524 = vmatmul.f32.gmra.mxu0 %v503
        %v525 = vpop.f32.mrf.mxu0
        %v526 = vadd.f32 0.0, %v525
        %527 = vmatmul.f32.gmra.mxu0 %v506
        %v528 = vpop.f32.mrf.mxu0
        %v529 = vadd.f32 0.0, %v528
        %530 = vdwg.mxu0
        %531 = vxpose.xlu0.b32.start [1/16] %v526, 128
        %532 = vxpose.xlu0.b32.cont [2/16] %v529, 128
        %533 = vxpose.xlu0.b32.cont [3/16] 0.0, 128
        %534 = vxpose.xlu0.b32.cont [4/16] 0.0, 128
        %535 = vxpose.xlu0.b32.cont [5/16] 0.0, 128
        %536 = vxpose.xlu0.b32.cont [6/16] 0.0, 128
        %537 = vxpose.xlu0.b32.cont [7/16] 0.0, 128
        %538 = vxpose.xlu0.b32.cont [8/16] 0.0, 128
        %539 = vxpose.xlu0.b32.cont [9/16] 0.0, 128
        %540 = vxpose.xlu0.b32.cont [10/16] 0.0, 128
        %541 = vxpose.xlu0.b32.cont [11/16] 0.0, 128
        %542 = vxpose.xlu0.b32.cont [12/16] 0.0, 128
        %543 = vxpose.xlu0.b32.cont [13/16] 0.0, 128
        %544 = vxpose.xlu0.b32.cont [14/16] 0.0, 128
        %545 = vxpose.xlu0.b32.cont [15/16] 0.0, 128
        %546 = vxpose.xlu0.b32.end [16/16] 0.0, 128
        %v547 = vpop.trf.xlu0
        %v548 = vpop.trf.xlu0
        %v549 = vpop.trf.xlu0
        %v550 = vpop.trf.xlu0
        %v551 = vpop.trf.xlu0
        %v552 = vpop.trf.xlu0
        %v553 = vpop.trf.xlu0
        %v554 = vpop.trf.xlu0
        %v555 = vpop.trf.xlu0
        %v556 = vpop.trf.xlu0
        %v557 = vpop.trf.xlu0
        %v558 = vpop.trf.xlu0
        %v559 = vpop.trf.xlu0
        %v560 = vpop.trf.xlu0
        %v561 = vpop.trf.xlu0
        %v562 = vpop.trf.xlu0
        %v563 = vmul.f32 %v547, %v422
        %v564 = vmul.f32 %v548, %v427
        %v565 = vmax.f32 %v563, 0.0
        %v566 = vmax.f32 %v564, 0.0
        %568 = vset.pattern.permute.xlu0 0
        %569 = vperm.xlu0 %568, %v385
        %v570 = vpop.permute.xlu0 %569
        %573 = vset.pattern.permute.xlu0 0
        %574 = vperm.xlu0 %573, %v386
        %v575 = vpop.permute.xlu0 %574
        %578 = vset.pattern.permute.xlu0 0
        %579 = vperm.xlu0 %578, %v387
        %v580 = vpop.permute.xlu0 %579
        %v582 = vmul.f32 %v493, %v570
        %v583 = vmul.f32 %v496, %v575
        %v584 = vmul.f32 %v499, %v580
        %v585 = vmax.f32 %v582, 0.0
        %v586 = vmax.f32 %v583, 0.0
        %v587 = vmax.f32 %v584, 0.0
        %v588 = vlaneseq
        %v589 = vshrl.u32 %v588, 7
        %v590 = vadd.s32 %v589, 8
        %v591 = vlaneseq
        %v592 = vand.u32 %v591, 127
        %s593 = smul.u32 %s23, 16
        %v594 = vstv %s593
        %v595 = vadd.s32 %v589, %v594
        %v596 = vadd.s32 %v590, %v594
        %vm597 = vcmp.eq.s32.totalorder %v592, %v595
        %vm598 = vcmp.eq.s32.totalorder %v592, %v596
        %v599 = vsel %vm597, 1.0, 0.0
        %v600 = vsel %vm598, 1.0, 0.0
        %v601 = vld [vmem:[#allocation2] sm:$0xff]
        %v602 = vld [vmem:[#allocation2 + $0x8] sm:$0xff]
        %v604 = vsel %vm465, %v565, 0
        %v607 = vsel %vm465, %v566, 0
        %609 = vmatpush.msra.mxu0 0.0
        %610 = vmatpush.msra.mxu0 0.0
        %611 = vmatpush.msra.mxu0 0.0
        %612 = vmatpush.msra.mxu0 0.0
        %613 = vmatpush.msra.mxu0 0.0
        %614 = vmatpush.msra.mxu0 0.0
        %615 = vmatpush.msra.mxu0 0.0
        %616 = vmatpush.msra.mxu0 0.0
        %617 = vmatpush.msra.mxu0 0.0
        %618 = vmatpush.msra.mxu0 0.0
        %619 = vmatpush.msra.mxu0 0.0
        %620 = vmatpush.msra.mxu0 0.0
        %621 = vmatpush.msra.mxu0 0.0
        %622 = vmatpush.msra.mxu0 0.0
        %623 = vmatpush.msra.mxu0 %v600
        %624 = vmatpush.msra.mxu0 %v599
        %625 = vmatmul.f32.gmra.mxu0 %v604
        %v626 = vpop.f32.mrf.mxu0
        %v627 = vadd.f32 0.0, %v626
        %628 = vmatmul.f32.gmra.mxu0 %v607
        %v629 = vpop.f32.mrf.mxu0
        %v630 = vadd.f32 0.0, %v629
        %631 = vdwg.mxu0
        %v632 = vadd.f32 %v601, %v627
        %v633 = vadd.f32 %v602, %v630
        %vm634 = vcmask 392192
        %635 = vst.msk [vmem:[#allocation2] sm:$0xff] %vm634, %v632
        %636 = vst.msk [vmem:[#allocation2 + $0x8] sm:$0xff] %vm634, %v633
        %v637 = vld [vmem:[#allocation4] sm:$0xff]
        %v638 = vld [vmem:[#allocation4 + $0x8] sm:$0xff]
        %v639 = vld [vmem:[#allocation4 + $0x10] sm:$0xff]
        %v641 = vsel %vm465, %v585, 0
        %v644 = vsel %vm465, %v586, 0
        %v647 = vsel %vm465, %v587, 0
        %649 = vmatpush.msra.mxu0 0.0
        %650 = vmatpush.msra.mxu0 0.0
        %651 = vmatpush.msra.mxu0 0.0
        %652 = vmatpush.msra.mxu0 0.0
        %653 = vmatpush.msra.mxu0 0.0
        %654 = vmatpush.msra.mxu0 0.0
        %655 = vmatpush.msra.mxu0 0.0
        %656 = vmatpush.msra.mxu0 0.0
        %657 = vmatpush.msra.mxu0 0.0
        %658 = vmatpush.msra.mxu0 0.0
        %659 = vmatpush.msra.mxu0 0.0
        %660 = vmatpush.msra.mxu0 0.0
        %661 = vmatpush.msra.mxu0 0.0
        %662 = vmatpush.msra.mxu0 0.0
        %663 = vmatpush.msra.mxu0 %v600
        %664 = vmatpush.msra.mxu0 %v599
        %665 = vmatmul.f32.gmra.mxu0 %v641
        %v666 = vpop.f32.mrf.mxu0
        %v667 = vadd.f32 0.0, %v666
        %668 = vmatmul.f32.gmra.mxu0 %v644
        %v669 = vpop.f32.mrf.mxu0
        %v670 = vadd.f32 0.0, %v669
        %671 = vmatmul.f32.gmra.mxu0 %v647
        %v672 = vpop.f32.mrf.mxu0
        %v673 = vadd.f32 0.0, %v672
        %674 = vdwg.mxu0
        %v675 = vadd.f32 %v637, %v667
        %v676 = vadd.f32 %v638, %v670
        %v677 = vadd.f32 %v639, %v673
        %678 = vst.msk [vmem:[#allocation4] sm:$0xff] %vm634, %v675
        %679 = vst.msk [vmem:[#allocation4 + $0x8] sm:$0xff] %vm634, %v676
        %680 = vst.msk [vmem:[#allocation4 + $0x10] sm:$0xff] %vm634, %v677
        // Predicated region
        $region57: #{gcmc_forward.1} parent=51 // pred_check
          %p681 = pneg %p219
        $region58: #{gcmc_forward.1} parent=51 // pred_check_branch
          %683 = sbr.rel (%p681) target = $region60
        $region59: #{gcmc_forward.1} parent=51 // pred_region
          %685 = vsyncadd [#allocation3], 0
          %s686 = sshll.u32 [#allocation2], 4
          %s687 = int_to_ptr.vmem [resolvable:$true] %s686
          %s688 = sshll.u32 %s8, 4
          %s689 = int_to_ptr.hbm [resolvable:$true] %s688
          %694 = dma.vmem_to_hbm [thread:$0]  %s687, 256, %s689, [#allocation3], 128, 128, 8
        $region60: #{gcmc_forward.1} parent=51 // pred_fallthru
          _
        // Predicated region
        $region61: #{gcmc_forward.1} parent=51 // pred_check
          %p695 = pneg %p240
        $region62: #{gcmc_forward.1} parent=51 // pred_check_branch
          %697 = sbr.rel (%p695) target = $region64
        $region63: #{gcmc_forward.1} parent=51 // pred_region
          %699 = vsyncadd [#allocation5], 0
          %s700 = sshll.u32 [#allocation4], 4
          %s701 = int_to_ptr.vmem [resolvable:$true] %s700
          %s702 = sshll.u32 %s9, 4
          %s703 = int_to_ptr.hbm [resolvable:$true] %s702
          %708 = dma.vmem_to_hbm [thread:$0]  %s701, 384, %s703, [#allocation5], 128, 128, 8
        $region64: #{gcmc_forward.1} parent=51 // pred_fallthru
          _
        // Predicated region
        $region65: #{gcmc_forward.1} parent=51 // pred_check
          %p709 = pneg %p219
        $region66: #{gcmc_forward.1} parent=51 // pred_check_branch
          %711 = sbr.rel (%p709) target = $region68
        $region67: #{gcmc_forward.1} parent=51 // pred_region
          %713 = dma.done [#allocation3], 256
        $region68: #{gcmc_forward.1} parent=51 // pred_fallthru
          _
        // Predicated region
        $region69: #{gcmc_forward.1} parent=51 // pred_check
          %p714 = pneg %p240
        $region70: #{gcmc_forward.1} parent=51 // pred_check_branch
          %716 = sbr.rel (%p714) target = $region72
        $region71: #{gcmc_forward.1} parent=51 // pred_region
          %718 = dma.done [#allocation5], 384
        $region72: #{gcmc_forward.1} parent=51 // pred_fallthru
          _
      $region52: #{gcmc_forward.1} parent=5 // pred_fallthru
        _
      %p719 = scmp.le.s32.totalorder 2, %s18
      // Predicated region
      $region73: #{gcmc_forward.1} parent=5 // pred_check
        %p720 = pneg %p719
      $region74: #{gcmc_forward.1} parent=5 // pred_check_branch
        %722 = sbr.rel (%p720) target = $region76
      $region75: #{gcmc_forward.1} parent=5 // pred_region
        %s723 = ssub.s32 %s18, 2
      $region76: #{gcmc_forward.1} parent=5 // pred_fallthru
        _
    $region6: #{gcmc_forward.1} parent=1 // loop_footer
      %s22 = sadd.s32 1, %s18
    $region7: #{gcmc_forward.1} parent=1 // loop_footer_branch
      %17 = sbr.rel target = $region3
    $region8: #{gcmc_forward.1} parent=1 // loop_exit
      _
    %724 = vsyncpa [#allocation3], 1
    %s725 = scalar_lea.sflag [#allocation3], 1
    %726 = vsyncpa %s725, 1
    %727 = vsyncpa [#allocation5], 1

</llo_original>
